<compile_context>
chip_gen: v5e
topology: v5e:2x2
jax: 0.10.0
libtpu: 0.0.40
codegen_flags: <defaults>
</compile_context>

<pallas_src>
import jax
import jax.numpy as jnp
from jax.experimental import pallas as pl
from jax.experimental.pallas import tpu as pltpu

_LANES = 128
_BLOCK_BYTES = 8 * 1024 * 1024          # target per-block buffer size (4-8 MiB sweet spot)
_VMEM_LIMIT_BYTES = 48 * 1024 * 1024    # fits v7x 64 MiB physical; trivial on v5e/v6e


def _round_up(x, m):
    return ((x + m - 1) // m) * m


# ----------------------------- kernels --------------------------------------

def _fused_channel_kernel(intens_ref, x_ref, o_ref):
    """grid=(C,). x_ref/o_ref: (1, rows, 128) == one whole lane-dense channel.

    Per-channel max, abs_max selection and scale+clamp fused into one HBM pass.
    intens_ref: SMEM (C,) float32.
    """
    c = pl.program_id(0)
    x = x_ref[...]
    mx = jnp.max(x)
    active = mx > 0.0
    abs_max = jnp.where(mx <= 1.0, 1.0,
                        jnp.where(mx <= 255.0, 255.0, 65535.0))
    eff = jnp.where(active, intens_ref[c], 1.0)
    lo = jnp.where(active, 0.0, -jnp.inf)
    hi = jnp.where(active, abs_max, jnp.inf)
    o_ref[...] = jnp.clip(x * eff, lo, hi)


def _fused_image_kernel(intens_ref, x_ref, o_ref):
    """Single block covering the whole (C, HW) image (non-lane-aligned HW path).

    intens_ref: VMEM (C, 1) float32.
    """
    x = x_ref[...]                                     # (C, HW)
    mx = jnp.max(x, axis=1, keepdims=True)             # (C, 1)
    active = mx > 0.0
    abs_max = jnp.where(mx <= 1.0, 1.0,
                        jnp.where(mx <= 255.0, 255.0, 65535.0))
    eff = jnp.where(active, intens_ref[...], 1.0)      # (C, 1)
    lo = jnp.where(active, 0.0, -jnp.inf)
    hi = jnp.where(active, abs_max, jnp.inf)
    o_ref[...] = jnp.clip(x * eff, lo, hi)


def _scale_clamp_rows_kernel(params_ref, x_ref, o_ref):
    """Two-pass fallback (huge lane-aligned channels). params_ref: SMEM (3, C)."""
    c = pl.program_id(0)
    o_ref[...] = jnp.clip(x_ref[...] * params_ref[0, c],
                          params_ref[1, c], params_ref[2, c])


def _scale_clamp_cols_kernel(params_ref, x_ref, o_ref):
    """Two-pass fallback on (C, HW) column tiles. params_ref: VMEM (C, 3)."""
    eff = params_ref[:, 0:1]
    lo = params_ref[:, 1:2]
    hi = params_ref[:, 2:3]
    o_ref[...] = jnp.clip(x_ref[...] * eff, lo, hi)


# ----------------------------- wrapper ---------------------------------------

def _channel_params(x2d, intens):
    """Per-channel (eff, lo, hi) scalars for the two-pass fallbacks."""
    mx = jnp.max(x2d, axis=1)
    active = mx > 0.0
    abs_max = jnp.where(mx <= 1.0, 1.0, jnp.where(mx <= 255.0, 255.0, 65535.0))
    eff = jnp.where(active, intens, 1.0)
    lo = jnp.where(active, 0.0, -jnp.inf)
    hi = jnp.where(active, abs_max, jnp.inf)
    return eff, lo, hi


def random_intensity_channel(img, intensities, *, block_bytes=_BLOCK_BYTES):
    """img: (C, H, W) float32; intensities: (C,) float32 in [0.8, 1.2)."""
    C, H, W = img.shape
    HW = H * W
    x = img.reshape(C, HW)
    intens = intensities.astype(jnp.float32)

    if HW % _LANES == 0:
        rows = HW // _LANES
        xr = x.reshape(C, rows, _LANES)
        chan_bytes = rows * _LANES * 4

        if chan_bytes <= block_bytes:
            # Fused single HBM pass: one whole channel per grid step.
            out = pl.pallas_call(
                _fused_channel_kernel,
                out_shape=jax.ShapeDtypeStruct((C, rows, _LANES), jnp.float32),
                grid=(C,),
                in_specs=[
                    pl.BlockSpec(memory_space=pltpu.MemorySpace.SMEM),          # intensities
                    pl.BlockSpec((1, rows, _LANES), lambda c: (c, 0, 0)),       # channel
                ],
                out_specs=pl.BlockSpec((1, rows, _LANES), lambda c: (c, 0, 0)),
                compiler_params=pltpu.CompilerParams(
                    dimension_semantics=("parallel",),
                    vmem_limit_bytes=_VMEM_LIMIT_BYTES),
            )(intens, xr)
            return out.reshape(C, H, W)

        # Fallback: channel too large for one block -> two-pass (XLA max + tiled scale).
        eff, lo, hi = _channel_params(x, intens)
        params = jnp.stack([eff, lo, hi]).astype(jnp.float32)                   # (3, C)
        cap_rows = max(8, (block_bytes // (_LANES * 4)) // 8 * 8)
        block_rows = rows if rows <= cap_rows else cap_rows                     # full dim or 8-aligned
        out = pl.pallas_call(
            _scale_clamp_rows_kernel,
            out_shape=jax.ShapeDtypeStruct((C, rows, _LANES), jnp.float32),
            grid=(C, pl.cdiv(rows, block_rows)),
            in_specs=[
                pl.BlockSpec(memory_space=pltpu.MemorySpace.SMEM),
                pl.BlockSpec((1, block_rows, _LANES), lambda c, r: (c, r, 0)),
            ],
            out_specs=pl.BlockSpec((1, block_rows, _LANES), lambda c, r: (c, r, 0)),
            compiler_params=pltpu.CompilerParams(
                dimension_semantics=("parallel", "parallel"),
                vmem_limit_bytes=_VMEM_LIMIT_BYTES),
        )(params, xr)
        return out.reshape(C, H, W)

    # ---- HW not a multiple of 128: operate on (C, HW) directly, no pad/slice ----
    if C * HW * 4 <= block_bytes:
        # Fused single block covering the whole image (full-dims block).
        out = pl.pallas_call(
            _fused_image_kernel,
            out_shape=jax.ShapeDtypeStruct((C, HW), jnp.float32),
            grid=(1,),
            in_specs=[
                pl.BlockSpec((C, 1), lambda i: (0, 0)),                          # intensities
                pl.BlockSpec((C, HW), lambda i: (0, 0)),                         # image
            ],
            out_specs=pl.BlockSpec((C, HW), lambda i: (0, 0)),
            compiler_params=pltpu.CompilerParams(
                dimension_semantics=("arbitrary",),
                vmem_limit_bytes=_VMEM_LIMIT_BYTES),
        )(intens.reshape(C, 1), x)
        return out.reshape(C, H, W)

    # Fallback: two-pass with (C, block_cols) column tiles; Pallas masks the
    # ragged last block (no staging pad / trailing slice passes).
    eff, lo, hi = _channel_params(x, intens)
    params = jnp.stack([eff, lo, hi], axis=1).astype(jnp.float32)                # (C, 3)
    cap_cols = max(_LANES, (block_bytes // (C * 4)) // _LANES * _LANES)
    block_cols = HW if HW <= cap_cols else cap_cols                              # full dim or 128-aligned
    out = pl.pallas_call(
        _scale_clamp_cols_kernel,
        out_shape=jax.ShapeDtypeStruct((C, HW), jnp.float32),
        grid=(pl.cdiv(HW, block_cols),),
        in_specs=[
            pl.BlockSpec((C, 3), lambda j: (0, 0)),
            pl.BlockSpec((C, block_cols), lambda j: (0, j)),
        ],
        out_specs=pl.BlockSpec((C, block_cols), lambda j: (0, j)),
        compiler_params=pltpu.CompilerParams(
            dimension_semantics=("parallel",),
            vmem_limit_bytes=_VMEM_LIMIT_BYTES),
    )(params, x)
    return out.reshape(C, H, W)


def reference(img, intensities):
    """Pure-JAX reference for correctness checking."""
    mx = jnp.max(img, axis=(1, 2), keepdims=True)                                # (C,1,1)
    abs_max = jnp.where(mx <= 1.0, 1.0, jnp.where(mx <= 255.0, 255.0, 65535.0))
    scaled = jnp.clip(img * intensities[:, None, None], 0.0, abs_max)
    return jnp.where(mx > 0.0, scaled, img)


if __name__ == "__main__":
    key = jax.random.PRNGKey(0)
    k_img, k_int, k_img2, k_int2 = jax.random.split(key, 4)

    run = jax.jit(random_intensity_channel, static_argnames=("block_bytes",))

    # Case 1: lane-aligned H*W -> fused per-channel single-pass path.
    # Varied per-channel ranges; ch2 is all-zero (must stay untouched).
    C, H, W = 4, 16, 16
    base = jax.random.uniform(k_img, (C, H, W), dtype=jnp.float32)
    scales = jnp.array([1.0, 200.0, 0.0, 1000.0], dtype=jnp.float32)
    img = base * scales[:, None, None]
    intens = jax.random.uniform(k_int, (C,), dtype=jnp.float32, minval=0.8, maxval=1.2)

    out = jax.block_until_ready(run(img, intens))
    ref = reference(img, intens)
    assert out.shape == img.shape and out.dtype == img.dtype
    assert jnp.allclose(out, ref, atol=1e-5, rtol=1e-5), "case 1 mismatch vs reference"

    # Case 2: H*W not a multiple of 128 -> fused whole-image path. Negative
    # values and a channel whose max <= 0 (left untouched, incl. its negatives).
    C2, H2, W2 = 3, 20, 24
    n = jax.random.normal(k_img2, (C2, H2, W2), dtype=jnp.float32)
    img2 = jnp.stack([
        n[0] * 50.0,             # mixed sign, active channel
        -jnp.abs(n[1]),          # max <= 0 -> untouched
        jnp.abs(n[2]) * 400.0,   # > 255 -> abs_max 65535
    ])
    intens2 = jax.random.uniform(k_int2, (C2,), dtype=jnp.float32, minval=0.8, maxval=1.2)

    out2 = jax.block_until_ready(run(img2, intens2))
    ref2 = reference(img2, intens2)
    assert jnp.allclose(out2, ref2, atol=1e-5, rtol=1e-5), "case 2 mismatch vs reference"

    # Case 3: force the two-pass fallback paths (the "channel too large" code)
    # at small shapes by shrinking the block budget to zero.
    out3 = jax.block_until_ready(run(img, intens, block_bytes=0))
    assert jnp.allclose(out3, ref, atol=1e-5, rtol=1e-5), "case 3a (row-tiled fallback) mismatch"
    out4 = jax.block_until_ready(run(img2, intens2, block_bytes=0))
    assert jnp.allclose(out4, ref2, atol=1e-5, rtol=1e-5), "case 3b (col-tiled fallback) mismatch"

    print("KERNEL_OK")
</pallas_src>

<mosaic_0001>
module attributes {stable_mosaic.version = 11 : i64} {
  func.func @_fused_channel_kernel(%arg0: i32, %arg1: memref<4xf32, #tpu.memory_space<smem>>, %arg2: memref<1x2x128xf32, #tpu.memory_space<vmem>>, %arg3: memref<1x2x128xf32, #tpu.memory_space<vmem>>) attributes {dimension_semantics = [#tpu.dimension_semantics<parallel>], iteration_bounds = array<i64: 4>, scalar_prefetch = 0 : i64, scratch_operands = 0 : i64, tpu.core_type = #tpu.core_type<tc>, window_params = [{transform_indices = @transform_0, window_bounds = array<i64: 4>}, {transform_indices = @transform_1, window_bounds = array<i64: 1, 2, 128>}, {transform_indices = @transform_2, window_bounds = array<i64: 1, 2, 128>}]} {
    %c0 = arith.constant 0 : index
    %c0_0 = arith.constant 0 : index
    %c0_1 = arith.constant 0 : index
    %0 = vector.load %arg2[%c0, %c0_0, %c0_1] : memref<1x2x128xf32, #tpu.memory_space<vmem>>, vector<1x2x128xf32>
    %1 = vector.shape_cast %0 : vector<1x2x128xf32> to vector<1x1x2x128xf32>
    %cst = arith.constant dense<0xFF800000> : vector<1xf32>
    %2 = vector.multi_reduction <maximumf>, %1, %cst [1, 2, 3] : vector<1x1x2x128xf32> to vector<1xf32>
    %3 = vector.shape_cast %2 : vector<1xf32> to vector<1x1x1x1xf32>
    %4 = vector.extract %3[0, 0, 0, 0] : f32 from vector<1x1x1x1xf32>
    %cst_2 = arith.constant 0.000000e+00 : f32
    %5 = arith.cmpf ogt, %4, %cst_2 : f32
    %cst_3 = arith.constant 1.000000e+00 : f32
    %6 = arith.cmpf ole, %4, %cst_3 : f32
    %cst_4 = arith.constant 2.550000e+02 : f32
    %7 = arith.cmpf ole, %4, %cst_4 : f32
    %cst_5 = arith.constant 2.550000e+02 : f32
    %cst_6 = arith.constant 6.553500e+04 : f32
    %8 = arith.select %7, %cst_5, %cst_6 : f32
    %cst_7 = arith.constant 1.000000e+00 : f32
    %9 = arith.select %6, %cst_7, %8 : f32
    %10 = arith.index_cast %arg0 : i32 to index
    %11 = memref.load %arg1[%10] : memref<4xf32, #tpu.memory_space<smem>>
    %cst_8 = arith.constant 1.000000e+00 : f32
    %12 = arith.select %5, %11, %cst_8 : f32
    %cst_9 = arith.constant 0.000000e+00 : f32
    %cst_10 = arith.constant 0xFF800000 : f32
    %13 = arith.select %5, %cst_9, %cst_10 : f32
    %cst_11 = arith.constant 0x7F800000 : f32
    %14 = arith.select %5, %9, %cst_11 : f32
    %15 = vector.broadcast %12 : f32 to vector<1x2x128xf32>
    %16 = arith.mulf %0, %15 : vector<1x2x128xf32>
    %17 = vector.broadcast %13 : f32 to vector<1x2x128xf32>
    %18 = arith.maximumf %17, %16 : vector<1x2x128xf32>
    %19 = vector.broadcast %14 : f32 to vector<1x2x128xf32>
    %20 = arith.minimumf %19, %18 : vector<1x2x128xf32>
    %c0_12 = arith.constant 0 : index
    %c0_13 = arith.constant 0 : index
    %c0_14 = arith.constant 0 : index
    %21 = vector.load %arg3[%c0_12, %c0_13, %c0_14] : memref<1x2x128xf32, #tpu.memory_space<vmem>>, vector<1x2x128xf32>
    tpu.vector_store %arg3[%c0_12, %c0_13, %c0_14], %20 {strides = array<i32>} : memref<1x2x128xf32, #tpu.memory_space<vmem>>, vector<1x2x128xf32>,
    return
  }
  func.func @transform_0(%arg0: i32) -> i32 {
    %c0_i32 = arith.constant 0 : i32
    %c0_i32_0 = arith.constant 0 : i32
    return %c0_i32 : i32
  }
  func.func @transform_1(%arg0: i32) -> (i32, i32, i32) {
    %c0_i32 = arith.constant 0 : i32
    %c0_i32_0 = arith.constant 0 : i32
    %c0_i32_1 = arith.constant 0 : i32
    return %arg0, %c0_i32, %c0_i32_0 : i32, i32, i32
  }
  func.func @transform_2(%arg0: i32) -> (i32, i32, i32) {
    %c0_i32 = arith.constant 0 : i32
    %c0_i32_0 = arith.constant 0 : i32
    %c0_i32_1 = arith.constant 0 : i32
    return %arg0, %c0_i32, %c0_i32_0 : i32, i32, i32
  }
}

</mosaic_0001>

<llo_original>
// kernel: random_intensity_channel.1
$region0: #{random_intensity_channel.1}
  #allocation0 [shape = 'u32[]', space=smem, size = 0x4, offset = 0x4, fixed_abs, tag = 'smem constant byte address 0x4 - core index']
  #allocation1 [shape = 'u32[72,128]{1,0:T(1,128)}', space=vmem, size = 0x9000, scoped, tag = 'internal scratch']
  %s0 = inlined_call_operand.vmem [shape: f32[4], index: 0, kind: input, shape index: {}]
  %s1 = inlined_call_operand.vmem [shape: f32[4,2,128], index: 1, kind: input, shape index: {}]
  %s2 = inlined_call_operand.vmem [shape: f32[4,2,128], index: 2, kind: output, shape index: {}]
  %s3 = sld [smem:[#allocation0]]
  $region45: #{random_intensity_channel.1} parent=0
    _
  %s5 = ssub.s32 1, %s3
  %s6 = scalar_select 0, %s5, %s3
  $region1: #{random_intensity_channel.1} parent=0
    #allocation2 [shape = 'u8[512]{0}', space=smem, size = 0x200, scoped, tag = 'input window, operand 0, single buffered']
    #allocation3 [shape = 's32[2]{0}', space=sflag, size = 0x8, scoped, tag = 'scoped memory for random_intensity_channel.1']
    %7 = vsyncpa [#allocation3], 0
    loop: start=0, step=1, limit=6
    $region2: #{random_intensity_channel.1} parent=1 // loop_pre_header
      _
    $region3: #{random_intensity_channel.1} parent=1 // loop_header
      %s9 = sphi 0, %s13
      %p10 = scmp.ge.s32.totalorder %s9, 6
      %s17 = sphi 0, %s17
      %s19 = sphi 0, %s17
      %s20 = sphi 0, %s19
      %s34 = sphi 0, %s20
      %s40 = sphi 0, %s42
      %s43 = sphi 0, %s40
      %s44 = sphi 0, %s43
      %s60 = sphi 0, %s44
      %s66 = sphi 0, %s68
      %s69 = sphi 0, %s66
      %s70 = sphi 0, %s69
      %s86 = sphi 0, %s70
    $region4: #{random_intensity_channel.1} parent=1 // loop_header_branch
      %12 = sbr.rel (%p10) target = $region8
    $region5: #{random_intensity_channel.1} parent=1 // loop_body
      %s14 = ssub.s32 %s9, 1
      %s15 = ssub.s32 %s9, 2
      %s16 = sadd.s32 %s9, 1
      %s18 = sadd.s32 %s17, 1
      %p21 = scmp.eq.s32.totalorder %s9, 3
      %p22 = scmp.ne.s32.totalorder %s17, %s19
      %p23 = scmp.eq.s32.totalorder %s9, 0
      %p24 = por %p22, %p23
      %p25 = scmp.ne.s32.totalorder %s17, %s19
      %p26 = scmp.eq.s32.totalorder %s14, 3
      %p27 = por %p25, %p26
      %p28 = scmp.ne.s32.totalorder %s19, %s20
      %p29 = scmp.eq.s32.totalorder %s14, 0
      %p30 = por %p28, %p29
      %p31 = scmp.ne.s32.totalorder %s19, %s20
      %p32 = scmp.eq.s32.totalorder %s15, 3
      %p33 = por %p31, %p32
      %p35 = scmp.ne.s32.totalorder %s20, %s34
      %p36 = scmp.eq.s32.totalorder %s15, 0
      %p37 = por %p35, %p36
      %s38 = ssub.s32 %s9, %s16
      %p39 = scmp.eq.s32.totalorder %s38, 0
      %s41 = sadd.s32 %s40, 1
      %s42 = scalar_select %p39, %s40, %s41
      %p45 = pneg %p39
      %p46 = scmp.eq.s32.totalorder %s9, 3
      %p47 = por %p45, %p46
      %p48 = scmp.ne.s32.totalorder %s40, %s43
      %p49 = scmp.eq.s32.totalorder %s9, 0
      %p50 = por %p48, %p49
      %p51 = scmp.ne.s32.totalorder %s40, %s43
      %p52 = scmp.eq.s32.totalorder %s14, 3
      %p53 = por %p51, %p52
      %p54 = scmp.ne.s32.totalorder %s43, %s44
      %p55 = scmp.eq.s32.totalorder %s14, 0
      %p56 = por %p54, %p55
      %p57 = scmp.ne.s32.totalorder %s43, %s44
      %p58 = scmp.eq.s32.totalorder %s15, 3
      %p59 = por %p57, %p58
      %p61 = scmp.ne.s32.totalorder %s44, %s60
      %p62 = scmp.eq.s32.totalorder %s15, 0
      %p63 = por %p61, %p62
      %s64 = ssub.s32 %s9, %s16
      %p65 = scmp.eq.s32.totalorder %s64, 0
      %s67 = sadd.s32 %s66, 1
      %s68 = scalar_select %p65, %s66, %s67
      %p71 = pneg %p65
      %p72 = scmp.eq.s32.totalorder %s9, 3
      %p73 = por %p71, %p72
      %p74 = scmp.ne.s32.totalorder %s66, %s69
      %p75 = scmp.eq.s32.totalorder %s9, 0
      %p76 = por %p74, %p75
      %p77 = scmp.ne.s32.totalorder %s66, %s69
      %p78 = scmp.eq.s32.totalorder %s14, 3
      %p79 = por %p77, %p78
      %p80 = scmp.ne.s32.totalorder %s69, %s70
      %p81 = scmp.eq.s32.totalorder %s14, 0
      %p82 = por %p80, %p81
      %p83 = scmp.ne.s32.totalorder %s69, %s70
      %p84 = scmp.eq.s32.totalorder %s15, 3
      %p85 = por %p83, %p84
      %p87 = scmp.ne.s32.totalorder %s70, %s86
      %p88 = scmp.eq.s32.totalorder %s15, 0
      %p89 = por %p87, %p88
      %p90 = scmp.le.s32.totalorder 1, %s9
      %p91 = scmp.lt.s32.totalorder %s9, 5
      %p92 = pnand %p90, %p91
      %p93 = pneg %p92
      // Predicated region
      $region9: #{random_intensity_channel.1} parent=5 // pred_check
        _
      $region10: #{random_intensity_channel.1} parent=5 // pred_check_branch
        %95 = sbr.rel (%p92) target = $region12
      $region11: #{random_intensity_channel.1} parent=5 // pred_region
        %s96 = ssub.s32 %s9, 1
        // Predicated region
        $region13: #{random_intensity_channel.1} parent=11 // pred_check
          %p97 = pneg %p30
        $region14: #{random_intensity_channel.1} parent=11 // pred_check_branch
          %99 = sbr.rel (%p97) target = $region16
        $region15: #{random_intensity_channel.1} parent=11 // pred_region
          %101 = vsyncadd [#allocation3], 0
          %s103 = sshll.u32 %s0, 4
          %s104 = int_to_ptr.vmem [resolvable:$true] %s103
          %106 = dma.vmem_to_smem %s104, 16, [#allocation2], [#allocation3]
        $region16: #{random_intensity_channel.1} parent=11 // pred_fallthru
          _
      $region12: #{random_intensity_channel.1} parent=5 // pred_fallthru
        _
      %p107 = scmp.lt.s32.totalorder %s9, 4
      // Predicated region
      $region17: #{random_intensity_channel.1} parent=5 // pred_check
        %p108 = pneg %p107
      $region18: #{random_intensity_channel.1} parent=5 // pred_check_branch
        %110 = sbr.rel (%p108) target = $region20
      $region19: #{random_intensity_channel.1} parent=5 // pred_region
        // Predicated region
        $region21: #{random_intensity_channel.1} parent=19 // pred_check
          %p111 = pneg %p50
        $region22: #{random_intensity_channel.1} parent=19 // pred_check_branch
          %113 = sbr.rel (%p111) target = $region24
        $region23: #{random_intensity_channel.1} parent=19 // pred_region
          %p114 = scmp.lt.s32.totalorder %s9, 3
          %s115 = scalar_select %p114, %s9, 3
          %s116 = smul.addr %s115, 2
          %s117 = scalar_lea.vmem %s1, %s116
        $region24: #{random_intensity_channel.1} parent=19 // pred_fallthru
          _
      $region20: #{random_intensity_channel.1} parent=5 // pred_fallthru
        _
      %p118 = scmp.le.s32.totalorder 1, %s9
      %p119 = scmp.lt.s32.totalorder %s9, 5
      %p120 = pnand %p118, %p119
      %p121 = pneg %p120
      // Predicated region
      $region25: #{random_intensity_channel.1} parent=5 // pred_check
        _
      $region26: #{random_intensity_channel.1} parent=5 // pred_check_branch
        %123 = sbr.rel (%p120) target = $region28
      $region27: #{random_intensity_channel.1} parent=5 // pred_region
        %s124 = ssub.s32 %s9, 1
        // Predicated region
        $region29: #{random_intensity_channel.1} parent=27 // pred_check
          %p125 = pneg %p30
        $region30: #{random_intensity_channel.1} parent=27 // pred_check_branch
          %127 = sbr.rel (%p125) target = $region32
        $region31: #{random_intensity_channel.1} parent=27 // pred_region
          %129 = dma.done [#allocation3], 16
        $region32: #{random_intensity_channel.1} parent=27 // pred_fallthru
          _
        %130 = sfence
        %p131 = pneg %p30
        %p132 = pneg %p27
        %p133 = scmp.lt.s32.totalorder %s14, 3
        %s134 = scalar_select %p133, %s14, 3
        %s135 = smul.addr %s134, 2
        %s136 = scalar_lea.vmem %s1, %s135
        %p137 = pneg %p56
        %p138 = pneg %p53
        %p139 = pneg %p82
        %p140 = pneg %p79
        %p141 = scmp.lt.s32.totalorder %s14, 3
        %s142 = scalar_select %p141, %s14, 3
        %s143 = smul.addr %s142, 2
        %s144 = scalar_lea.vmem %s2, %s143
        %p145 = scmp.lt.s32.totalorder %s14, 3
        %s146 = scalar_select %p145, %s14, 3
        %s147 = smul.addr %s146, 2
        %s148 = scalar_lea.vmem %s1, %s147
        %p149 = scmp.lt.s32.totalorder %s14, 3
        %s150 = scalar_select %p149, %s14, 3
        %s151 = smul.addr %s150, 2
        %s152 = scalar_lea.vmem %s2, %s151
        %v153 = vld [vmem:[%s148] sm:$0x3]
        %vm154 = vcmask 1041408
        %v155 = vsel %vm154, %v153, -inf
        %156 = vmax.xlane.f32.xlu0 %v155
        %v157 = vpop.xlane.xlu0 %156
        %v158 = vrot.slane %v157, 4
        %v159 = vmax.f32 %v157, %v158
        %v160 = vrot.slane %v159, 2
        %v161 = vmax.f32 %v159, %v160
        %v162 = vrot.slane %v161, 1
        %v163 = vmax.f32 %v161, %v162
        %s164 = vtos %v163
        %p165 = scmp.gt.f32.partialorder %s164, 0.0
        %p166 = scmp.le.f32.partialorder %s164, 1.0
        %p167 = scmp.le.f32.partialorder %s164, 255.0
        %s168 = scalar_select %p167, 255.0, 65535.0
        %s169 = scalar_select %p166, 1.0, %s168
        %s170 = sld [smem:[#allocation2 + %s14]]
        %s171 = scalar_select %p165, %s170, 1.0
        %s172 = scalar_select %p165, 0.0, -inf
        %s173 = scalar_select %p165, %s169, inf
        %v174 = vstv %s171
        %v175 = vmul.f32 %v153, %v174
        %v176 = vstv %s172
        %v177 = vmax.f32 %v176, %v175
        %v178 = vstv %s173
        %v179 = vmin.f32 %v178, %v177
        %180 = vst [vmem:[%s152] sm:$0x3] %v179
        %p181 = scmp.lt.s32.totalorder %s14, 3
        %s182 = scalar_select %p181, %s14, 3
        %s183 = smul.addr %s182, 2
        %s184 = scalar_lea.vmem %s2, %s183
        // Predicated region
        $region33: #{random_intensity_channel.1} parent=27 // pred_check
          %p185 = pneg %p79
        $region34: #{random_intensity_channel.1} parent=27 // pred_check_branch
          %187 = sbr.rel (%p185) target = $region36
        $region35: #{random_intensity_channel.1} parent=27 // pred_region
          _
        $region36: #{random_intensity_channel.1} parent=27 // pred_fallthru
          _
      $region28: #{random_intensity_channel.1} parent=5 // pred_fallthru
        _
      %p188 = scmp.le.s32.totalorder 2, %s9
      // Predicated region
      $region37: #{random_intensity_channel.1} parent=5 // pred_check
        %p189 = pneg %p188
      $region38: #{random_intensity_channel.1} parent=5 // pred_check_branch
        %191 = sbr.rel (%p189) target = $region40
      $region39: #{random_intensity_channel.1} parent=5 // pred_region
        %s192 = ssub.s32 %s9, 2
        // Predicated region
        $region41: #{random_intensity_channel.1} parent=39 // pred_check
          %p193 = pneg %p85
        $region42: #{random_intensity_channel.1} parent=39 // pred_check_branch
          %195 = sbr.rel (%p193) target = $region44
        $region43: #{random_intensity_channel.1} parent=39 // pred_region
          %p196 = scmp.lt.s32.totalorder %s15, 3
          %s197 = scalar_select %p196, %s15, 3
          %s198 = smul.addr %s197, 2
          %s199 = scalar_lea.vmem %s2, %s198
        $region44: #{random_intensity_channel.1} parent=39 // pred_fallthru
          _
      $region40: #{random_intensity_channel.1} parent=5 // pred_fallthru
        _
    $region6: #{random_intensity_channel.1} parent=1 // loop_footer
      %s13 = sadd.s32 1, %s9
    $region7: #{random_intensity_channel.1} parent=1 // loop_footer_branch
      %8 = sbr.rel target = $region3
    $region8: #{random_intensity_channel.1} parent=1 // loop_exit
      _
    %200 = vsyncpa [#allocation3], 1
    %s201 = scalar_lea.sflag [#allocation3], 1
    %202 = vsyncpa %s201, 1

</llo_original>
